<compile_context>
chip_gen: v5e
topology: v5e:2x2
jax: 0.10.0
libtpu: 0.0.40
codegen_flags: <defaults>
</compile_context>

<pallas_src>
import jax
import jax.numpy as jnp
from jax.experimental import pallas as pl
from jax.experimental.pallas import tpu as pltpu


def peter_mlp_kernel(x_ref, w1_ref, b1_ref, w2_ref, b2_ref, out_ref):
    # hidden = sigmoid(x @ W1 + b1)  -- bf16 MXU inputs, f32 accumulation.
    xb = x_ref[...].astype(jnp.bfloat16)                  # no-op if x already bf16
    h = jnp.dot(xb, w1_ref[...], preferred_element_type=jnp.float32)
    h = h + b1_ref[...]                                   # (1, E) broadcast
    # sigmoid(h) == 0.5*(tanh(0.5*h) + 1): halves EUP transcendental count.
    m = 0.5 * (jnp.tanh(0.5 * h) + 1.0)                   # f32 on EUP/VPU
    # rating = m @ W2 + b2 with N=1  ->  VPU mul + XLU lane reduce (no MXU pass).
    r = jnp.sum(m * w2_ref[...], axis=-1, keepdims=True)  # (TB, 1) f32
    r = r + b2_ref[0]                                     # scalar bias from SMEM
    out_ref[...] = r.astype(out_ref.dtype)


def _round_up(x, m):
    return ((x + m - 1) // m) * m


def peter_mlp(x, w1, b1, w2, b2, *, tb=2048,
              vmem_budget_bytes=14 * 1024 * 1024):
    """x: (B, E) float (bf16 preferred — pass it already in bf16 to halve the
    x HBM stream; f32 is also accepted and cast in-kernel).
    w1: (E, E) in->out layout (cast to bf16); b1: (E,);
    w2: (1, E) / (E, 1) / (E,); b2: (1,).  Returns (B,) f32."""
    B, E = x.shape
    w1_bf16 = w1.astype(jnp.bfloat16)
    w2_row = jnp.asarray(w2).reshape(1, E).astype(jnp.float32)
    b1_row = jnp.asarray(b1).reshape(1, E).astype(jnp.float32)
    b2_vec = jnp.asarray(b2).reshape(1).astype(jnp.float32)

    # Batch tile: multiple of 8 (sublane), capped by B, shrunk to fit VMEM.
    tb = max(8, _round_up(tb, 8))
    TB = min(tb, _round_up(B, 8))

    x_itemsize = jnp.dtype(x.dtype).itemsize
    E_lanes = _round_up(E, 128)

    def footprint(tb_):
        x_bytes = 2 * tb_ * E_lanes * x_itemsize      # double-buffered x tiles
        w1_bytes = 2 * E_lanes * E_lanes * 2          # resident W1 (assume 2 bufs)
        out_bytes = 2 * tb_ * 128 * 4                 # (TB,1) lane-pads to 128
        misc_bytes = 4 * 8 * E_lanes * 4              # b1 / w2 rows (+ slack)
        return x_bytes + w1_bytes + out_bytes + misc_bytes

    while TB > 8 and footprint(TB) > vmem_budget_bytes:
        TB = max(8, _round_up(TB // 2, 8))

    need = footprint(TB)
    vmem_limit = int(need * 1.25) if need > vmem_budget_bytes else None

    B_pad = _round_up(B, TB)
    if B_pad != B:
        x = jnp.pad(x, ((0, B_pad - B), (0, 0)))

    out = pl.pallas_call(
        peter_mlp_kernel,
        out_shape=jax.ShapeDtypeStruct((B_pad, 1), jnp.float32),
        grid_spec=pl.GridSpec(
            grid=(B_pad // TB,),
            in_specs=[
                pl.BlockSpec((TB, E), lambda i: (i, 0)),      # x tile (pipelined)
                pl.BlockSpec((E, E), lambda i: (0, 0)),       # W1 (VMEM-resident)
                pl.BlockSpec((1, E), lambda i: (0, 0)),       # b1 row
                pl.BlockSpec((1, E), lambda i: (0, 0)),       # W2 row
                pl.BlockSpec(memory_space=pltpu.MemorySpace.SMEM),  # b2 scalar
            ],
            out_specs=pl.BlockSpec((TB, 1), lambda i: (i, 0)),
        ),
        compiler_params=pltpu.CompilerParams(
            dimension_semantics=("parallel",),                # megacore on v7x
            vmem_limit_bytes=vmem_limit),
    )(x, w1_bf16, b1_row, w2_row, b2_vec)

    return out.reshape(-1)[:B]                                # matches .view(-1)


def init_params(key, emsize):
    """Matches PyTorch init_weights(): uniform(-0.1, 0.1) weights, zero biases.
    W1 returned pre-transposed (in, out) in bf16; W2 in native (1, E) f32."""
    initrange = 0.1
    k1, k2 = jax.random.split(key)
    w1_pt = jax.random.uniform(k1, (emsize, emsize), jnp.float32,
                               -initrange, initrange)         # (out, in)
    w2_pt = jax.random.uniform(k2, (1, emsize), jnp.float32,
                               -initrange, initrange)         # (1, E)
    w1 = w1_pt.T.astype(jnp.bfloat16)                         # (E, E) in->out
    w2 = w2_pt                                                # (1, E) f32
    b1 = jnp.zeros((emsize,), jnp.float32)
    b2 = jnp.zeros((1,), jnp.float32)
    return w1, b1, w2, b2


if __name__ == "__main__":
    EMSIZE = 128     # small, lane-aligned stand-in for the default 512
    BATCH = 100      # non-multiple of 8 -> exercises tb rounding + padding

    key = jax.random.PRNGKey(0)
    k_x, k_p = jax.random.split(key)

    # Upstream producer delivers bf16 activations (halves the x HBM stream).
    hidden = jax.random.normal(k_x, (BATCH, EMSIZE), jnp.float32).astype(jnp.bfloat16)
    w1, b1, w2, b2 = init_params(k_p, EMSIZE)

    rating = peter_mlp(hidden, w1, b1, w2, b2)        # default tb=2048 -> TB=104 here
    rating = jax.block_until_ready(rating)
    assert rating.shape == (BATCH,)

    # Reference with matching bf16 matmul inputs + f32 accumulation.
    h_ref = jnp.dot(hidden, w1, preferred_element_type=jnp.float32) + b1
    m_ref = jax.nn.sigmoid(h_ref)
    ref = jnp.sum(m_ref * w2.reshape(1, -1), axis=-1) + b2[0]
    assert jnp.allclose(rating, ref, atol=1e-3, rtol=1e-3), \
        float(jnp.max(jnp.abs(rating - ref)))

    # Loose sanity check against a pure-f32 reference (bf16 inputs drift a bit).
    h32 = hidden.astype(jnp.float32) @ w1.astype(jnp.float32) + b1
    ref32 = (jax.nn.sigmoid(h32) @ w2.reshape(-1, 1) + b2).reshape(-1)
    assert jnp.allclose(rating, ref32, atol=5e-2, rtol=5e-2)

    print("KERNEL_OK")
</pallas_src>

<mosaic_0001>
module attributes {stable_mosaic.version = 11 : i64} {
  func.func @peter_mlp_kernel(%arg0: i32, %arg1: memref<104x128xbf16, #tpu.memory_space<vmem>>, %arg2: memref<128x128xbf16, #tpu.memory_space<vmem>>, %arg3: memref<1x128xf32, #tpu.memory_space<vmem>>, %arg4: memref<1x128xf32, #tpu.memory_space<vmem>>, %arg5: memref<1xf32, #tpu.memory_space<smem>>, %arg6: memref<104x1xf32, #tpu.memory_space<vmem>>) attributes {dimension_semantics = [#tpu.dimension_semantics<parallel>], iteration_bounds = array<i64: 1>, scalar_prefetch = 0 : i64, scratch_operands = 0 : i64, tpu.core_type = #tpu.core_type<tc>, window_params = [{transform_indices = @transform_0, window_bounds = array<i64: 104, 128>}, {pipeline_mode = #tpu.pipeline_mode<synchronous>, transform_indices = @transform_1, window_bounds = array<i64: 128, 128>}, {pipeline_mode = #tpu.pipeline_mode<synchronous>, transform_indices = @transform_2, window_bounds = array<i64: 1, 128>}, {pipeline_mode = #tpu.pipeline_mode<synchronous>, transform_indices = @transform_3, window_bounds = array<i64: 1, 128>}, {transform_indices = @transform_4, window_bounds = array<i64: 1>}, {transform_indices = @transform_5, window_bounds = array<i64: 104, 1>}]} {
    %c0 = arith.constant 0 : index
    %c0_0 = arith.constant 0 : index
    %0 = vector.load %arg1[%c0, %c0_0] : memref<104x128xbf16, #tpu.memory_space<vmem>>, vector<104x128xbf16>
    %c0_1 = arith.constant 0 : index
    %c0_2 = arith.constant 0 : index
    %1 = vector.load %arg2[%c0_1, %c0_2] : memref<128x128xbf16, #tpu.memory_space<vmem>>, vector<128x128xbf16>
    %cst = arith.constant dense<0.000000e+00> : vector<104x128xf32>
    %2 = tpu.matmul %0, %1, %cst {dimension_numbers = #tpu.dot_dimension_numbers<[1], [0], [0], [1], [0, 0, 1, 1], [], []>} : vector<104x128xbf16>, vector<128x128xbf16>, vector<104x128xf32> -> vector<104x128xf32>
    %c0_3 = arith.constant 0 : index
    %c0_4 = arith.constant 0 : index
    %3 = vector.load %arg3[%c0_3, %c0_4] : memref<1x128xf32, #tpu.memory_space<vmem>>, vector<1x128xf32>
    %4 = vector.broadcast %3 : vector<1x128xf32> to vector<104x128xf32>
    %5 = arith.addf %2, %4 : vector<104x128xf32>
    %cst_5 = arith.constant 5.000000e-01 : f32
    %6 = vector.broadcast %cst_5 : f32 to vector<104x128xf32>
    %7 = arith.mulf %6, %5 : vector<104x128xf32>
    %8 = math.tanh %7 : vector<104x128xf32>
    %cst_6 = arith.constant 1.000000e+00 : f32
    %9 = vector.broadcast %cst_6 : f32 to vector<104x128xf32>
    %10 = arith.addf %8, %9 : vector<104x128xf32>
    %cst_7 = arith.constant 5.000000e-01 : f32
    %11 = vector.broadcast %cst_7 : f32 to vector<104x128xf32>
    %12 = arith.mulf %11, %10 : vector<104x128xf32>
    %c0_8 = arith.constant 0 : index
    %c0_9 = arith.constant 0 : index
    %13 = vector.load %arg4[%c0_8, %c0_9] : memref<1x128xf32, #tpu.memory_space<vmem>>, vector<1x128xf32>
    %14 = vector.broadcast %13 : vector<1x128xf32> to vector<104x128xf32>
    %15 = arith.mulf %12, %14 : vector<104x128xf32>
    %cst_10 = arith.constant dense<0.000000e+00> : vector<104xf32>
    %16 = vector.multi_reduction <add>, %15, %cst_10 [1] : vector<104x128xf32> to vector<104xf32>
    %17 = vector.shape_cast %16 : vector<104xf32> to vector<104x1xf32>
    %c0_11 = arith.constant 0 : index
    %18 = memref.load %arg5[%c0_11] : memref<1xf32, #tpu.memory_space<smem>>
    %19 = vector.broadcast %18 : f32 to vector<104x1xf32>
    %20 = arith.addf %17, %19 : vector<104x1xf32>
    %c0_12 = arith.constant 0 : index
    %c0_13 = arith.constant 0 : index
    %21 = vector.load %arg6[%c0_12, %c0_13] : memref<104x1xf32, #tpu.memory_space<vmem>>, vector<104x1xf32>
    tpu.vector_store %arg6[%c0_12, %c0_13], %20 {strides = array<i32>} : memref<104x1xf32, #tpu.memory_space<vmem>>, vector<104x1xf32>,
    return
  }
  func.func @transform_0(%arg0: i32) -> (i32, i32) {
    %c0_i32 = arith.constant 0 : i32
    %c0_i32_0 = arith.constant 0 : i32
    return %arg0, %c0_i32 : i32, i32
  }
  func.func @transform_1(%arg0: i32) -> (i32, i32) {
    %c0_i32 = arith.constant 0 : i32
    %c0_i32_0 = arith.constant 0 : i32
    %c0_i32_1 = arith.constant 0 : i32
    return %c0_i32, %c0_i32_0 : i32, i32
  }
  func.func @transform_2(%arg0: i32) -> (i32, i32) {
    %c0_i32 = arith.constant 0 : i32
    %c0_i32_0 = arith.constant 0 : i32
    %c0_i32_1 = arith.constant 0 : i32
    return %c0_i32, %c0_i32_0 : i32, i32
  }
  func.func @transform_3(%arg0: i32) -> (i32, i32) {
    %c0_i32 = arith.constant 0 : i32
    %c0_i32_0 = arith.constant 0 : i32
    %c0_i32_1 = arith.constant 0 : i32
    return %c0_i32, %c0_i32_0 : i32, i32
  }
  func.func @transform_4(%arg0: i32) -> i32 {
    %c0_i32 = arith.constant 0 : i32
    %c0_i32_0 = arith.constant 0 : i32
    return %c0_i32 : i32
  }
  func.func @transform_5(%arg0: i32) -> (i32, i32) {
    %c0_i32 = arith.constant 0 : i32
    %c0_i32_0 = arith.constant 0 : i32
    return %arg0, %c0_i32 : i32, i32
  }
}

</mosaic_0001>

<llo_original>
// kernel: tpu_custom_call.1
$region0: #{tpu_custom_call.1}
  #allocation0 [shape = 'u32[]', space=smem, size = 0x4, offset = 0x4, fixed_abs, tag = 'smem constant byte address 0x4 - core index']
  #allocation1 [shape = 'u32[72,128]{1,0:T(1,128)}', space=vmem, size = 0x9000, scoped, tag = 'internal scratch']
  #allocation2 [shape = 'f32[1]{0:T(128)S(6)}', space=smem, size = 0x200, scoped, tag = 'scoped memory for tpu_custom_call.1']
  %s0 = inlined_call_operand.hbm [shape: bf16[104,128], index: 0, kind: input, shape index: {}]
  %s1 = inlined_call_operand.hbm [shape: bf16[128,128], index: 1, kind: input, shape index: {}]
  %s2 = inlined_call_operand.vmem [shape: f32[1,128], index: 2, kind: input, shape index: {}]
  %s3 = inlined_call_operand.vmem [shape: f32[1,128], index: 3, kind: input, shape index: {}]
  %s4 = inlined_call_operand.<no memory space> [shape: f32[1], index: 4, kind: input, shape index: {}]
  %s5 = inlined_call_operand.vmem [shape: f32[104,1], index: 5, kind: output, shape index: {}]
  %s6 = sld [smem:[#allocation0]]
  $region38: #{tpu_custom_call.1} parent=0
    _
  %s8 = ssub.s32 1, %s6
  %s9 = scalar_select 0, %s8, %s6
  %10 = sst [smem:[#allocation2]] %s4
  $region1: #{tpu_custom_call.1} parent=0
    #allocation3 [shape = 'u8[26624]{0}', space=vmem, size = 0x6800, scoped, tag = 'input window, operand 0, single buffered']
    #allocation4 [shape = 's32[1]{0}', space=sflag, size = 0x4, scoped, tag = 'scoped memory for tpu_custom_call.1']
    #allocation5 [shape = 'u8[32768]{0}', space=vmem, size = 0x8000, scoped, tag = 'input window, operand 1, single buffered']
    #allocation6 [shape = 's32[1]{0}', space=sflag, size = 0x4, scoped, tag = 'scoped memory for tpu_custom_call.1']
    %11 = vsyncpa [#allocation4], 0
    %12 = vsyncpa [#allocation6], 0
    // Predicated region
    $region2: #{tpu_custom_call.1} parent=1 // pred_check
      _
    $region3: #{tpu_custom_call.1} parent=1 // pred_check_branch
      %14 = sbr.rel (0) target = $region5
    $region4: #{tpu_custom_call.1} parent=1 // pred_region
      %16 = vsyncadd [#allocation4], 0
      %s17 = sshll.u32 %s0, 4
      %s18 = int_to_ptr.hbm [resolvable:$true] %s17
      %s19 = sshll.u32 [#allocation3], 4
      %s20 = int_to_ptr.vmem [resolvable:$true] %s19
      %25 = dma.hbm_to_vmem [thread:$0]  %s18, 832, %s20, [#allocation4], 64, 64, 4
    $region5: #{tpu_custom_call.1} parent=1 // pred_fallthru
      _
    // Predicated region
    $region6: #{tpu_custom_call.1} parent=1 // pred_check
      _
    $region7: #{tpu_custom_call.1} parent=1 // pred_check_branch
      %27 = sbr.rel (0) target = $region9
    $region8: #{tpu_custom_call.1} parent=1 // pred_region
      %29 = vsyncadd [#allocation6], 0
      %s30 = sshll.u32 %s1, 4
      %s31 = int_to_ptr.hbm [resolvable:$true] %s30
      %s32 = sshll.u32 [#allocation5], 4
      %s33 = int_to_ptr.vmem [resolvable:$true] %s32
      %38 = dma.hbm_to_vmem [thread:$0]  %s31, 1024, %s33, [#allocation6], 64, 64, 4
    $region9: #{tpu_custom_call.1} parent=1 // pred_fallthru
      _
    // Predicated region
    $region10: #{tpu_custom_call.1} parent=1 // pred_check
      _
    $region11: #{tpu_custom_call.1} parent=1 // pred_check_branch
      %40 = sbr.rel (0) target = $region13
    $region12: #{tpu_custom_call.1} parent=1 // pred_region
      _
    $region13: #{tpu_custom_call.1} parent=1 // pred_fallthru
      _
    // Predicated region
    $region14: #{tpu_custom_call.1} parent=1 // pred_check
      _
    $region15: #{tpu_custom_call.1} parent=1 // pred_check_branch
      %42 = sbr.rel (0) target = $region17
    $region16: #{tpu_custom_call.1} parent=1 // pred_region
      _
    $region17: #{tpu_custom_call.1} parent=1 // pred_fallthru
      _
    // Predicated region
    $region18: #{tpu_custom_call.1} parent=1 // pred_check
      _
    $region19: #{tpu_custom_call.1} parent=1 // pred_check_branch
      %44 = sbr.rel (0) target = $region21
    $region20: #{tpu_custom_call.1} parent=1 // pred_region
      _
    $region21: #{tpu_custom_call.1} parent=1 // pred_fallthru
      _
    // Predicated region
    $region22: #{tpu_custom_call.1} parent=1 // pred_check
      _
    $region23: #{tpu_custom_call.1} parent=1 // pred_check_branch
      %46 = sbr.rel (0) target = $region25
    $region24: #{tpu_custom_call.1} parent=1 // pred_region
      %48 = dma.done [#allocation4], 832
    $region25: #{tpu_custom_call.1} parent=1 // pred_fallthru
      _
    // Predicated region
    $region26: #{tpu_custom_call.1} parent=1 // pred_check
      _
    $region27: #{tpu_custom_call.1} parent=1 // pred_check_branch
      %50 = sbr.rel (0) target = $region29
    $region28: #{tpu_custom_call.1} parent=1 // pred_region
      %52 = dma.done [#allocation6], 1024
    $region29: #{tpu_custom_call.1} parent=1 // pred_fallthru
      _
    %v53 = vld [vmem:[#allocation3] sm:$0xf]
    %v54 = vld [vmem:[#allocation3 + $0x4] sm:$0xf]
    %v55 = vld [vmem:[#allocation3 + $0x8] sm:$0xf]
    %v56 = vld [vmem:[#allocation3 + $0xc] sm:$0xf]
    %v57 = vld [vmem:[#allocation3 + $0x10] sm:$0xf]
    %v58 = vld [vmem:[#allocation3 + $0x14] sm:$0xf]
    %v59 = vld [vmem:[#allocation3 + $0x18] sm:$0xf]
    %v60 = vld [vmem:[#allocation3 + $0x1c] sm:$0xf]
    %v61 = vld [vmem:[#allocation3 + $0x20] sm:$0xf]
    %v62 = vld [vmem:[#allocation3 + $0x24] sm:$0xf]
    %v63 = vld [vmem:[#allocation3 + $0x28] sm:$0xf]
    %v64 = vld [vmem:[#allocation3 + $0x2c] sm:$0xf]
    %v65 = vld [vmem:[#allocation3 + $0x30] sm:$0xf]
    %v66 = vld [vmem:[#allocation5] sm:$0xf]
    %v67 = vld [vmem:[#allocation5 + $0x4] sm:$0xf]
    %v68 = vld [vmem:[#allocation5 + $0x8] sm:$0xf]
    %v69 = vld [vmem:[#allocation5 + $0xc] sm:$0xf]
    %v70 = vld [vmem:[#allocation5 + $0x10] sm:$0xf]
    %v71 = vld [vmem:[#allocation5 + $0x14] sm:$0xf]
    %v72 = vld [vmem:[#allocation5 + $0x18] sm:$0xf]
    %v73 = vld [vmem:[#allocation5 + $0x1c] sm:$0xf]
    %v74 = vld [vmem:[#allocation5 + $0x20] sm:$0xf]
    %v75 = vld [vmem:[#allocation5 + $0x24] sm:$0xf]
    %v76 = vld [vmem:[#allocation5 + $0x28] sm:$0xf]
    %v77 = vld [vmem:[#allocation5 + $0x2c] sm:$0xf]
    %v78 = vld [vmem:[#allocation5 + $0x30] sm:$0xf]
    %v79 = vld [vmem:[#allocation5 + $0x34] sm:$0xf]
    %v80 = vld [vmem:[#allocation5 + $0x38] sm:$0xf]
    %v81 = vld [vmem:[#allocation5 + $0x3c] sm:$0xf]
    %v82 = vld [vmem:[%s2] sm:$0x1]
    %v84 = vperm.slane %v82, 0
    %v99 = vunpack.c.l.b16 %v53
    %v100 = vunpack.c.l.b16 %v54
    %v101 = vunpack.c.l.b16 %v55
    %v102 = vunpack.c.l.b16 %v56
    %v103 = vunpack.c.l.b16 %v57
    %v104 = vunpack.c.l.b16 %v58
    %v105 = vunpack.c.l.b16 %v59
    %v106 = vunpack.c.l.b16 %v60
    %v107 = vunpack.c.l.b16 %v61
    %v108 = vunpack.c.l.b16 %v62
    %v109 = vunpack.c.l.b16 %v63
    %v110 = vunpack.c.l.b16 %v64
    %v111 = vunpack.c.l.b16 %v65
    %v112 = vpack.c.b16 %v100, %v99
    %v113 = vpack.c.b16 %v102, %v101
    %v114 = vpack.c.b16 %v104, %v103
    %v115 = vpack.c.b16 %v106, %v105
    %v116 = vpack.c.b16 %v108, %v107
    %v117 = vpack.c.b16 %v110, %v109
    %v118 = vpack.c.b16 %v111, %v111
    %v142 = vunpack.c.l.b16 %v66
    %v143 = vunpack.c.l.b16 %v67
    %v144 = vunpack.c.l.b16 %v68
    %v145 = vunpack.c.l.b16 %v69
    %v146 = vunpack.c.l.b16 %v70
    %v147 = vunpack.c.l.b16 %v71
    %v148 = vunpack.c.l.b16 %v72
    %v149 = vunpack.c.l.b16 %v73
    %v150 = vunpack.c.l.b16 %v74
    %v151 = vunpack.c.l.b16 %v75
    %v152 = vunpack.c.l.b16 %v76
    %v153 = vunpack.c.l.b16 %v77
    %v154 = vunpack.c.l.b16 %v78
    %v155 = vunpack.c.l.b16 %v79
    %v156 = vunpack.c.l.b16 %v80
    %v157 = vunpack.c.l.b16 %v81
    %v158 = vpack.c.b16 %v143, %v142
    %v159 = vpack.c.b16 %v145, %v144
    %v160 = vpack.c.b16 %v147, %v146
    %v161 = vpack.c.b16 %v149, %v148
    %v162 = vpack.c.b16 %v151, %v150
    %v163 = vpack.c.b16 %v153, %v152
    %v164 = vpack.c.b16 %v155, %v154
    %v165 = vpack.c.b16 %v157, %v156
    %174 = vmatpush.bf16.msra.mxu0 %v165
    %175 = vmatpush.bf16.msra.mxu0 %v164
    %176 = vmatpush.bf16.msra.mxu0 %v163
    %177 = vmatpush.bf16.msra.mxu0 %v162
    %178 = vmatpush.bf16.msra.mxu0 %v161
    %179 = vmatpush.bf16.msra.mxu0 %v160
    %180 = vmatpush.bf16.msra.mxu0 %v159
    %181 = vmatpush.bf16.msra.mxu0 %v158
    %182 = vmatmul.bf16.gmra.mxu0 %v112
    %v183 = vpop.f32.mrf.mxu0
    %v184 = vadd.f32 %v84, %v183
    %v185 = vpop.f32.mrf.mxu0
    %v186 = vadd.f32 %v84, %v185
    %187 = vmatmul.bf16.gmra.mxu0 %v113
    %v188 = vpop.f32.mrf.mxu0
    %v189 = vadd.f32 %v84, %v188
    %v190 = vpop.f32.mrf.mxu0
    %v191 = vadd.f32 %v84, %v190
    %192 = vmatmul.bf16.gmra.mxu0 %v114
    %v193 = vpop.f32.mrf.mxu0
    %v194 = vadd.f32 %v84, %v193
    %v195 = vpop.f32.mrf.mxu0
    %v196 = vadd.f32 %v84, %v195
    %197 = vmatmul.bf16.gmra.mxu0 %v115
    %v198 = vpop.f32.mrf.mxu0
    %v199 = vadd.f32 %v84, %v198
    %v200 = vpop.f32.mrf.mxu0
    %v201 = vadd.f32 %v84, %v200
    %202 = vmatmul.bf16.gmra.mxu0 %v116
    %v203 = vpop.f32.mrf.mxu0
    %v204 = vadd.f32 %v84, %v203
    %v205 = vpop.f32.mrf.mxu0
    %v206 = vadd.f32 %v84, %v205
    %207 = vmatmul.bf16.gmra.mxu0 %v117
    %v208 = vpop.f32.mrf.mxu0
    %v209 = vadd.f32 %v84, %v208
    %v210 = vpop.f32.mrf.mxu0
    %v211 = vadd.f32 %v84, %v210
    %212 = vmatmul.bf16.gmra.mxu0 %v118
    %v213 = vpop.f32.mrf.mxu0
    %v214 = vadd.f32 %v84, %v213
    %v215 = vpop.f32.mrf.mxu0
    %216 = vdwg.mxu0
    %v217 = vmul.f32 %v184, 0.5
    %v218 = vmul.f32 %v186, 0.5
    %v219 = vmul.f32 %v189, 0.5
    %v220 = vmul.f32 %v191, 0.5
    %v221 = vmul.f32 %v194, 0.5
    %v222 = vmul.f32 %v196, 0.5
    %v223 = vmul.f32 %v199, 0.5
    %v224 = vmul.f32 %v201, 0.5
    %v225 = vmul.f32 %v204, 0.5
    %v226 = vmul.f32 %v206, 0.5
    %v227 = vmul.f32 %v209, 0.5
    %v228 = vmul.f32 %v211, 0.5
    %v229 = vmul.f32 %v214, 0.5
    %v230 = vtanh.pop %v217
    %v231 = vtanh.pop %v218
    %v232 = vtanh.pop %v219
    %v233 = vtanh.pop %v220
    %v234 = vtanh.pop %v221
    %v235 = vtanh.pop %v222
    %v236 = vtanh.pop %v223
    %v237 = vtanh.pop %v224
    %v238 = vtanh.pop %v225
    %v239 = vtanh.pop %v226
    %v240 = vtanh.pop %v227
    %v241 = vtanh.pop %v228
    %v242 = vtanh.pop %v229
    %v243 = vadd.f32 %v230, 1.0
    %v244 = vadd.f32 %v231, 1.0
    %v245 = vadd.f32 %v232, 1.0
    %v246 = vadd.f32 %v233, 1.0
    %v247 = vadd.f32 %v234, 1.0
    %v248 = vadd.f32 %v235, 1.0
    %v249 = vadd.f32 %v236, 1.0
    %v250 = vadd.f32 %v237, 1.0
    %v251 = vadd.f32 %v238, 1.0
    %v252 = vadd.f32 %v239, 1.0
    %v253 = vadd.f32 %v240, 1.0
    %v254 = vadd.f32 %v241, 1.0
    %v255 = vadd.f32 %v242, 1.0
    %v256 = vmul.f32 %v243, 0.5
    %v257 = vmul.f32 %v244, 0.5
    %v258 = vmul.f32 %v245, 0.5
    %v259 = vmul.f32 %v246, 0.5
    %v260 = vmul.f32 %v247, 0.5
    %v261 = vmul.f32 %v248, 0.5
    %v262 = vmul.f32 %v249, 0.5
    %v263 = vmul.f32 %v250, 0.5
    %v264 = vmul.f32 %v251, 0.5
    %v265 = vmul.f32 %v252, 0.5
    %v266 = vmul.f32 %v253, 0.5
    %v267 = vmul.f32 %v254, 0.5
    %v268 = vmul.f32 %v255, 0.5
    %v269 = vld [vmem:[%s3] sm:$0x1]
    %v271 = vperm.slane %v269, 0
    %v273 = vmul.f32 %v256, %v271
    %v274 = vmul.f32 %v257, %v271
    %v275 = vmul.f32 %v258, %v271
    %v276 = vmul.f32 %v259, %v271
    %v277 = vmul.f32 %v260, %v271
    %v278 = vmul.f32 %v261, %v271
    %v279 = vmul.f32 %v262, %v271
    %v280 = vmul.f32 %v263, %v271
    %v281 = vmul.f32 %v264, %v271
    %v282 = vmul.f32 %v265, %v271
    %v283 = vmul.f32 %v266, %v271
    %v284 = vmul.f32 %v267, %v271
    %v285 = vmul.f32 %v268, %v271
    %286 = vadd.xlane.f32.xlu0 %v273
    %v287 = vpop.xlane.xlu0 %286
    %288 = vadd.xlane.f32.xlu0 %v274
    %v289 = vpop.xlane.xlu0 %288
    %290 = vadd.xlane.f32.xlu0 %v275
    %v291 = vpop.xlane.xlu0 %290
    %292 = vadd.xlane.f32.xlu0 %v276
    %v293 = vpop.xlane.xlu0 %292
    %294 = vadd.xlane.f32.xlu0 %v277
    %v295 = vpop.xlane.xlu0 %294
    %296 = vadd.xlane.f32.xlu0 %v278
    %v297 = vpop.xlane.xlu0 %296
    %298 = vadd.xlane.f32.xlu0 %v279
    %v299 = vpop.xlane.xlu0 %298
    %300 = vadd.xlane.f32.xlu0 %v280
    %v301 = vpop.xlane.xlu0 %300
    %302 = vadd.xlane.f32.xlu0 %v281
    %v303 = vpop.xlane.xlu0 %302
    %304 = vadd.xlane.f32.xlu0 %v282
    %v305 = vpop.xlane.xlu0 %304
    %306 = vadd.xlane.f32.xlu0 %v283
    %v307 = vpop.xlane.xlu0 %306
    %308 = vadd.xlane.f32.xlu0 %v284
    %v309 = vpop.xlane.xlu0 %308
    %310 = vadd.xlane.f32.xlu0 %v285
    %v311 = vpop.xlane.xlu0 %310
    %s312 = sld [smem:[#allocation2]]
    %v313 = vstv %s312
    %v314 = vadd.f32 %v287, %v313
    %v315 = vadd.f32 %v289, %v313
    %v316 = vadd.f32 %v291, %v313
    %v317 = vadd.f32 %v293, %v313
    %v318 = vadd.f32 %v295, %v313
    %v319 = vadd.f32 %v297, %v313
    %v320 = vadd.f32 %v299, %v313
    %v321 = vadd.f32 %v301, %v313
    %v322 = vadd.f32 %v303, %v313
    %v323 = vadd.f32 %v305, %v313
    %v324 = vadd.f32 %v307, %v313
    %v325 = vadd.f32 %v309, %v313
    %v326 = vadd.f32 %v311, %v313
    %vm327 = vcmask 7168
    %328 = vst.msk [vmem:[%s5] sm:$0xff] %vm327, %v314
    %329 = vst.msk [vmem:[%s5 + $0x8] sm:$0xff] %vm327, %v315
    %330 = vst.msk [vmem:[%s5 + $0x10] sm:$0xff] %vm327, %v316
    %331 = vst.msk [vmem:[%s5 + $0x18] sm:$0xff] %vm327, %v317
    %332 = vst.msk [vmem:[%s5 + $0x20] sm:$0xff] %vm327, %v318
    %333 = vst.msk [vmem:[%s5 + $0x28] sm:$0xff] %vm327, %v319
    %334 = vst.msk [vmem:[%s5 + $0x30] sm:$0xff] %vm327, %v320
    %335 = vst.msk [vmem:[%s5 + $0x38] sm:$0xff] %vm327, %v321
    %336 = vst.msk [vmem:[%s5 + $0x40] sm:$0xff] %vm327, %v322
    %337 = vst.msk [vmem:[%s5 + $0x48] sm:$0xff] %vm327, %v323
    %338 = vst.msk [vmem:[%s5 + $0x50] sm:$0xff] %vm327, %v324
    %339 = vst.msk [vmem:[%s5 + $0x58] sm:$0xff] %vm327, %v325
    %340 = vst.msk [vmem:[%s5 + $0x60] sm:$0xff] %vm327, %v326
    // Predicated region
    $region30: #{tpu_custom_call.1} parent=1 // pred_check
      _
    $region31: #{tpu_custom_call.1} parent=1 // pred_check_branch
      %342 = sbr.rel (0) target = $region33
    $region32: #{tpu_custom_call.1} parent=1 // pred_region
      _
    $region33: #{tpu_custom_call.1} parent=1 // pred_fallthru
      _
    // Predicated region
    $region34: #{tpu_custom_call.1} parent=1 // pred_check
      _
    $region35: #{tpu_custom_call.1} parent=1 // pred_check_branch
      %344 = sbr.rel (0) target = $region37
    $region36: #{tpu_custom_call.1} parent=1 // pred_region
      _
    $region37: #{tpu_custom_call.1} parent=1 // pred_fallthru
      _
    %345 = vsyncpa [#allocation4], 1
    %346 = vsyncpa [#allocation6], 1

</llo_original>
